<compile_context>
chip_gen: v6e
topology: v6e:2x2x1
jax: 0.10.0
libtpu: 0.0.40
codegen_flags: <defaults>
</compile_context>

<pallas_src>
import functools

import jax
import jax.numpy as jnp
from jax.experimental import pallas as pl
from jax.experimental.pallas import tpu as pltpu


def _round_up(x, m):
    return ((x + m - 1) // m) * m


def _linear_kernel(x_ref, w_ref, b_ref, o_ref, *, nfeature, pack):
    # x_ref: (TB, pack*F) packed rows (VMEM, pipelined)
    # w_ref: (1, pack*F)  weight row tiled `pack` times (VMEM, resident, f32)
    # b_ref: (1,)         bias scalar (SMEM)
    # o_ref: (TB, pack)   one output per original row
    y = x_ref[...].astype(jnp.float32) * w_ref[...]        # VPU broadcast multiply
    b = b_ref[0]
    parts = []
    for j in range(pack):                                   # static unroll (pack <= 4 typ.)
        seg = y[:, j * nfeature:(j + 1) * nfeature]         # (TB, F) lane segment
        parts.append(jnp.sum(seg, axis=-1, keepdims=True))  # XLU lane reduce, f32
    acc = parts[0] if pack == 1 else jnp.concatenate(parts, axis=-1)   # (TB, pack)
    o_ref[...] = (acc + b).astype(o_ref.dtype)


@functools.partial(jax.jit, static_argnames=("block_rows",))
def linear_regression_forward(x, weight, bias, *, block_rows=None):
    """Forward pass of nn.Linear(nfeature, 1).

    x:      (B, F) float32
    weight: (1, F) float32 (PyTorch layout)
    bias:   (1,)   float32
    returns (B, 1) float32
    """
    B, F = x.shape
    out_dtype = x.dtype
    itemsize = jnp.dtype(x.dtype).itemsize

    # Keep the weight in f32 (do NOT downcast to x.dtype); accumulate in f32.
    w = weight.reshape(1, F).astype(jnp.float32)
    b = bias.reshape(1).astype(jnp.float32)

    # Lane-packing factor: fold `pack` rows into one 128-lane row when possible.
    pack = 128 // F if (0 < F < 128 and 128 % F == 0) else 1
    width = pack * F
    w_tiled = jnp.tile(w, (1, pack)) if pack > 1 else w

    # Pad the batch only to a multiple of 8*pack (<= 31 rows; no copy at all for
    # typical aligned batch sizes).  Tile-level raggedness is handled by the grid.
    pad_to = 8 * pack
    b_pad = _round_up(B, pad_to)
    if b_pad != B:
        x = jnp.pad(x, ((0, b_pad - B), (0, 0)))
    rows = b_pad // pack
    xp = x.reshape(rows, width)          # free, row-major-contiguous reshape

    # Per-generation tile sizing.  VMEM footprints are lane-padded to 128.
    in_lanes = _round_up(width, 128)
    out_lanes = _round_up(pack, 128)
    try:
        vmem_cap = int(pltpu.get_tpu_info().vmem_capacity_bytes)
    except Exception:
        vmem_cap = 64 << 20              # conservative (v7x per-TC VMEM)

    if block_rows is None:
        budget = vmem_cap // 3                                   # pipeline budget
        per_row = 2 * (in_lanes + out_lanes) * itemsize          # 2 = double buffer
        block_rows = max(8, (budget // per_row) // 8 * 8)
    tb = min(block_rows, rows)
    tb = max(8, (tb // 8) * 8)

    grid = (pl.cdiv(rows, tb),)

    need = 2 * tb * (in_lanes + out_lanes) * itemsize + (2 << 20)
    vmem_limit = int(min(max(16 << 20, need + (4 << 20)), vmem_cap * 7 // 8))

    kernel = functools.partial(_linear_kernel, nfeature=F, pack=pack)

    out = pl.pallas_call(
        kernel,
        out_shape=jax.ShapeDtypeStruct((rows, pack), out_dtype),
        grid=grid,
        in_specs=[
            pl.BlockSpec((tb, width), lambda i: (i, 0)),            # packed x tile, pipelined
            pl.BlockSpec((1, width), lambda i: (0, 0)),             # tiled weight row, resident
            pl.BlockSpec(memory_space=pltpu.MemorySpace.SMEM),      # bias scalar
        ],
        out_specs=pl.BlockSpec((tb, pack), lambda i: (i, 0)),
        compiler_params=pltpu.CompilerParams(
            dimension_semantics=("parallel",),
            vmem_limit_bytes=vmem_limit,
        ),
    )(xp, w_tiled, b)

    # (rows, pack) -> (b_pad, 1) is another free row-major reshape.
    return out.reshape(b_pad, 1)[:B]


if __name__ == "__main__":
    key = jax.random.PRNGKey(0)
    kx1, kw, kb, kx2, kx3 = jax.random.split(key, 5)

    nfeature = 32

    # Deterministic parameter init (matches nn.Linear's uniform(-1/sqrt(F), 1/sqrt(F))).
    bound = 1.0 / jnp.sqrt(jnp.float32(nfeature))
    weight = jax.random.uniform(kw, (1, nfeature), jnp.float32, -bound, bound)
    bias = jax.random.uniform(kb, (1,), jnp.float32, -bound, bound)

    def ref_fn(xv):
        return xv @ weight.T + bias

    # Case 1: small batch, not a multiple of the packing granularity (pad path).
    x1 = jax.random.normal(kx1, (10, nfeature), jnp.float32)
    o1 = jax.block_until_ready(linear_regression_forward(x1, weight, bias))
    assert o1.shape == (10, 1)
    assert jnp.allclose(o1, ref_fn(x1), atol=1e-5, rtol=1e-5)

    # Case 2: multi-step grid with a ragged final block (forced small tile).
    x2 = jax.random.normal(kx2, (260, nfeature), jnp.float32)
    o2 = jax.block_until_ready(
        linear_regression_forward(x2, weight, bias, block_rows=16))
    assert o2.shape == (260, 1)
    assert jnp.allclose(o2, ref_fn(x2), atol=1e-5, rtol=1e-5)

    # Case 3: aligned batch -> zero-copy path (no padding), default tile sizing.
    x3 = jax.random.normal(kx3, (512, nfeature), jnp.float32)
    o3 = jax.block_until_ready(linear_regression_forward(x3, weight, bias))
    assert o3.shape == (512, 1)
    assert jnp.allclose(o3, ref_fn(x3), atol=1e-5, rtol=1e-5)

    print("KERNEL_OK")
</pallas_src>

<mosaic_0001>
module attributes {stable_mosaic.version = 11 : i64} {
  func.func @_linear_kernel(%arg0: i32, %arg1: memref<8x128xf32, #tpu.memory_space<vmem>>, %arg2: memref<1x128xf32, #tpu.memory_space<vmem>>, %arg3: memref<1xf32, #tpu.memory_space<smem>>, %arg4: memref<8x4xf32, #tpu.memory_space<vmem>>) attributes {dimension_semantics = [#tpu.dimension_semantics<parallel>], iteration_bounds = array<i64: 1>, scalar_prefetch = 0 : i64, scratch_operands = 0 : i64, tpu.core_type = #tpu.core_type<tc>, window_params = [{transform_indices = @transform_0, window_bounds = array<i64: 8, 128>}, {pipeline_mode = #tpu.pipeline_mode<synchronous>, transform_indices = @transform_1, window_bounds = array<i64: 1, 128>}, {transform_indices = @transform_2, window_bounds = array<i64: 1>}, {transform_indices = @transform_3, window_bounds = array<i64: 8, 4>}]} {
    %c0 = arith.constant 0 : index
    %c0_0 = arith.constant 0 : index
    %0 = vector.load %arg1[%c0, %c0_0] : memref<8x128xf32, #tpu.memory_space<vmem>>, vector<8x128xf32>
    %c0_1 = arith.constant 0 : index
    %c0_2 = arith.constant 0 : index
    %1 = vector.load %arg2[%c0_1, %c0_2] : memref<1x128xf32, #tpu.memory_space<vmem>>, vector<1x128xf32>
    %2 = vector.broadcast %1 : vector<1x128xf32> to vector<8x128xf32>
    %3 = arith.mulf %0, %2 : vector<8x128xf32>
    %c0_3 = arith.constant 0 : index
    %4 = memref.load %arg3[%c0_3] : memref<1xf32, #tpu.memory_space<smem>>
    %5 = vector.extract_strided_slice %3 {offsets = [0, 0], sizes = [8, 32], strides = [1, 1]} : vector<8x128xf32> to vector<8x32xf32>
    %cst = arith.constant dense<0.000000e+00> : vector<8xf32>
    %6 = vector.multi_reduction <add>, %5, %cst [1] : vector<8x32xf32> to vector<8xf32>
    %7 = vector.shape_cast %6 : vector<8xf32> to vector<8x1xf32>
    %8 = vector.extract_strided_slice %3 {offsets = [0, 32], sizes = [8, 32], strides = [1, 1]} : vector<8x128xf32> to vector<8x32xf32>
    %cst_4 = arith.constant dense<0.000000e+00> : vector<8xf32>
    %9 = vector.multi_reduction <add>, %8, %cst_4 [1] : vector<8x32xf32> to vector<8xf32>
    %10 = vector.shape_cast %9 : vector<8xf32> to vector<8x1xf32>
    %11 = vector.extract_strided_slice %3 {offsets = [0, 64], sizes = [8, 32], strides = [1, 1]} : vector<8x128xf32> to vector<8x32xf32>
    %cst_5 = arith.constant dense<0.000000e+00> : vector<8xf32>
    %12 = vector.multi_reduction <add>, %11, %cst_5 [1] : vector<8x32xf32> to vector<8xf32>
    %13 = vector.shape_cast %12 : vector<8xf32> to vector<8x1xf32>
    %14 = vector.extract_strided_slice %3 {offsets = [0, 96], sizes = [8, 32], strides = [1, 1]} : vector<8x128xf32> to vector<8x32xf32>
    %cst_6 = arith.constant dense<0.000000e+00> : vector<8xf32>
    %15 = vector.multi_reduction <add>, %14, %cst_6 [1] : vector<8x32xf32> to vector<8xf32>
    %16 = vector.shape_cast %15 : vector<8xf32> to vector<8x1xf32>
    %17 = tpu.concatenate %7, %10, %13, %16 in 1 : vector<8x1xf32>, vector<8x1xf32>, vector<8x1xf32>, vector<8x1xf32> -> vector<8x4xf32>
    %18 = vector.broadcast %4 : f32 to vector<8x4xf32>
    %19 = arith.addf %17, %18 : vector<8x4xf32>
    %c0_7 = arith.constant 0 : index
    %c0_8 = arith.constant 0 : index
    %20 = vector.load %arg4[%c0_7, %c0_8] : memref<8x4xf32, #tpu.memory_space<vmem>>, vector<8x4xf32>
    tpu.vector_store %arg4[%c0_7, %c0_8], %19 {strides = array<i32>} : memref<8x4xf32, #tpu.memory_space<vmem>>, vector<8x4xf32>,
    return
  }
  func.func @transform_0(%arg0: i32) -> (i32, i32) {
    %c0_i32 = arith.constant 0 : i32
    %c0_i32_0 = arith.constant 0 : i32
    return %arg0, %c0_i32 : i32, i32
  }
  func.func @transform_1(%arg0: i32) -> (i32, i32) {
    %c0_i32 = arith.constant 0 : i32
    %c0_i32_0 = arith.constant 0 : i32
    %c0_i32_1 = arith.constant 0 : i32
    return %c0_i32, %c0_i32_0 : i32, i32
  }
  func.func @transform_2(%arg0: i32) -> i32 {
    %c0_i32 = arith.constant 0 : i32
    %c0_i32_0 = arith.constant 0 : i32
    return %c0_i32 : i32
  }
  func.func @transform_3(%arg0: i32) -> (i32, i32) {
    %c0_i32 = arith.constant 0 : i32
    %c0_i32_0 = arith.constant 0 : i32
    return %arg0, %c0_i32 : i32, i32
  }
}

</mosaic_0001>

<llo_original>
// kernel: linear_regression_forward.1
$region0: #{linear_regression_forward.1}
  #allocation0 [shape = 'u32[]', space=smem, size = 0x4, offset = 0x4, fixed_abs, tag = 'smem constant byte address 0x4 - core index']
  #allocation1 [shape = 'u32[144,128]{1,0:T(1,128)}', space=vmem, size = 0x12000, scoped, tag = 'internal scratch']
  #allocation2 [shape = 'f32[1]{0:T(128)S(6)}', space=smem, size = 0x200, scoped, tag = 'scoped memory for linear_regression_forward.1']
  %s0 = inlined_call_operand.vmem [shape: f32[8,128], index: 0, kind: input, shape index: {}]
  %s1 = inlined_call_operand.vmem [shape: f32[1,128], index: 1, kind: input, shape index: {}]
  %s2 = inlined_call_operand.<no memory space> [shape: f32[1], index: 2, kind: input, shape index: {}]
  %s3 = inlined_call_operand.vmem [shape: f32[8,4], index: 3, kind: output, shape index: {}]
  %s4 = sld [smem:[#allocation0]]
  $region22: #{linear_regression_forward.1} parent=0
    _
  %s6 = ssub.s32 1, %s4
  %s7 = scalar_select 0, %s6, %s4
  %8 = sst [smem:[#allocation2]] %s2
  // Predicated region
  $region2: #{linear_regression_forward.1} parent=0 // pred_check
    _
  $region3: #{linear_regression_forward.1} parent=0 // pred_check_branch
    %10 = sbr.rel (0) target = $region5
  $region4: #{linear_regression_forward.1} parent=0 // pred_region
    _
  $region5: #{linear_regression_forward.1} parent=0 // pred_fallthru
    _
  // Predicated region
  $region6: #{linear_regression_forward.1} parent=0 // pred_check
    _
  $region7: #{linear_regression_forward.1} parent=0 // pred_check_branch
    %12 = sbr.rel (0) target = $region9
  $region8: #{linear_regression_forward.1} parent=0 // pred_region
    _
  $region9: #{linear_regression_forward.1} parent=0 // pred_fallthru
    _
  // Predicated region
  $region10: #{linear_regression_forward.1} parent=0 // pred_check
    _
  $region11: #{linear_regression_forward.1} parent=0 // pred_check_branch
    %14 = sbr.rel (0) target = $region13
  $region12: #{linear_regression_forward.1} parent=0 // pred_region
    _
  $region13: #{linear_regression_forward.1} parent=0 // pred_fallthru
    _
  %v15 = vld [vmem:[%s0] sm:$0xff]
  %v16 = vld [vmem:[%s1] sm:$0x1]
  %v18 = vlaneseq
  %v19 = vshrl.u32 %v18, 7
  %v20 = vsub.s32 0, %v19
  %v21 = vrot.slane %v16, %v20
  %v23 = vmul.f32 %v15, %v21
  %s24 = sld [smem:[#allocation2]]
  %vm25 = vcmask 261120
  %v26 = vsel %vm25, %v23, 0.0
  %27 = vadd.xlane.f32.xlu0 %v26
  %v28 = vpop.xlane.xlu0 %27
  %30 = vrot.lane.b32.xlu0 %v23, 96
  %v31 = vpop.permute.xlu0 %30
  %v33 = vsel %vm25, %v31, 0.0
  %34 = vadd.xlane.f32.xlu0 %v33
  %v35 = vpop.xlane.xlu0 %34
  %36 = vrot.lane.b32.xlu0 %v23, 64
  %v37 = vpop.permute.xlu0 %36
  %v39 = vsel %vm25, %v37, 0.0
  %40 = vadd.xlane.f32.xlu0 %v39
  %v41 = vpop.xlane.xlu0 %40
  %42 = vrot.lane.b32.xlu0 %v23, 32
  %v43 = vpop.permute.xlu0 %42
  %v45 = vsel %vm25, %v43, 0.0
  %46 = vadd.xlane.f32.xlu0 %v45
  %v47 = vpop.xlane.xlu0 %46
  %vm48 = vcmask 7168
  %v49 = vsel %vm48, %v28, %v35
  %vm50 = vcmask 15360
  %v51 = vsel %vm50, %v49, %v41
  %vm52 = vcmask 23552
  %v53 = vsel %vm52, %v51, %v47
  %v54 = vstv %s24
  %v55 = vadd.f32 %v53, %v54
  %vm56 = vcmask 31744
  %57 = vst.msk [vmem:[%s3] sm:$0xff] %vm56, %v55
  // Predicated region
  $region14: #{linear_regression_forward.1} parent=0 // pred_check
    _
  $region15: #{linear_regression_forward.1} parent=0 // pred_check_branch
    %59 = sbr.rel (0) target = $region17
  $region16: #{linear_regression_forward.1} parent=0 // pred_region
    _
  $region17: #{linear_regression_forward.1} parent=0 // pred_fallthru
    _
  // Predicated region
  $region18: #{linear_regression_forward.1} parent=0 // pred_check
    _
  $region19: #{linear_regression_forward.1} parent=0 // pred_check_branch
    %61 = sbr.rel (0) target = $region21
  $region20: #{linear_regression_forward.1} parent=0 // pred_region
    _
  $region21: #{linear_regression_forward.1} parent=0 // pred_fallthru
    _

</llo_original>
